<compile_context>
chip_gen: v7x
topology: tpu7x:2x2x1
jax: 0.10.0
libtpu: 0.0.40
codegen_flags: <defaults>
</compile_context>

<pallas_src>
import functools
import math

import jax
import jax.numpy as jnp
from jax.experimental import pallas as pl
from jax.experimental.pallas import tpu as pltpu


def _myloss_kernel(theta_ref, alpha_ref, out_ref, *, half_scale):
    # Elementwise hot path on the current VMEM tile:
    #   add (VPU) -> cos (VALU poly) -> scale (VPU) -> tanh (EUP) -> axpy (VPU)
    # alpha block may be (1, C) and broadcasts against (block_rows, C).
    t = theta_ref[...]
    a = alpha_ref[...]
    if t.dtype != jnp.float32:
        t = t.astype(jnp.float32)
    if a.dtype != jnp.float32:
        a = a.astype(jnp.float32)
    z = half_scale * jnp.cos(t + a)            # 0.5 * s * cos(theta + alpha)
    # sigmoid(s*cos) == 0.5 * (tanh(0.5*s*cos) + 1)   (single EUP op)
    out_ref[...] = (0.5 * jnp.tanh(z) + 0.5).astype(out_ref.dtype)


def _pick_block_rows(rows, lane, target_block_bytes):
    """Rows per block: multiple of 8 (or full extent); >=2 even grid steps when rows allow."""
    if rows < 16:
        return rows                                      # full-extent block (always legal)
    f32_row_bytes = lane * 4
    ideal = max(8, target_block_bytes // f32_row_bytes)  # ~target bytes per f32 block
    steps = max(2, -(-rows // ideal))                    # at least 2 grid steps
    if steps % 2:
        steps += 1                                       # even steps -> balanced on 2-TC v7x
    block_rows = -(-rows // steps)
    block_rows = ((block_rows + 7) // 8) * 8             # sublane multiple of 8
    return min(block_rows, rows)


def _compiler_params(step_bytes):
    vmem_limit = int(min(48 << 20, max(16 << 20, 2 * step_bytes + (8 << 20))))
    return pltpu.CompilerParams(
        dimension_semantics=("parallel",),
        vmem_limit_bytes=vmem_limit,
    )


def my_loss_forward(theta, alpha_list, *, scale,
                    target_block_bytes=2 << 20,
                    min_pallas_elems=1 << 20,
                    force_pallas=False):
    """Equivalent of myLoss.forward: sigmoid(scale * cos(theta + alpha_list))."""
    scale = float(scale)
    out_dtype = jnp.result_type(theta.dtype, alpha_list.dtype)
    if not jnp.issubdtype(out_dtype, jnp.floating):
        out_dtype = jnp.float32

    out_shape = jnp.broadcast_shapes(theta.shape, alpha_list.shape)
    n_out = math.prod(out_shape)
    if n_out == 0:
        return jnp.zeros(out_shape, out_dtype)

    # Tiny inputs: a fused XLA elementwise expression beats a custom-call launch.
    if (not force_pallas) and n_out < min_pallas_elems:
        return jax.nn.sigmoid(scale * jnp.cos(theta + alpha_list)).astype(out_dtype)

    kernel = functools.partial(_myloss_kernel, half_scale=0.5 * scale)
    out_isz = jnp.dtype(out_dtype).itemsize

    # ---------- Per-class alpha path: alpha (C,) or (1, C) stays resident in VMEM.
    if (theta.ndim == 2
            and alpha_list.shape in ((theta.shape[1],), (1, theta.shape[1]))
            and theta.shape[1] % 128 == 0):
        B, C = theta.shape
        a2d = alpha_list.reshape(1, C)
        block_rows = _pick_block_rows(B, C, target_block_bytes)
        grid = (pl.cdiv(B, block_rows),)
        step_bytes = block_rows * C * (theta.dtype.itemsize + out_isz) + C * a2d.dtype.itemsize
        cost = pl.CostEstimate(
            flops=int(20 * B * C),
            transcendentals=int(2 * B * C),
            bytes_accessed=int(B * C * (theta.dtype.itemsize + out_isz)
                               + C * a2d.dtype.itemsize))
        out = pl.pallas_call(
            kernel,
            out_shape=jax.ShapeDtypeStruct((B, C), out_dtype),
            grid_spec=pltpu.PrefetchScalarGridSpec(
                num_scalar_prefetch=0,
                grid=grid,
                in_specs=[
                    pl.BlockSpec((block_rows, C), lambda i: (i, 0)),
                    pl.BlockSpec((1, C), lambda i: (0, 0)),   # resident alpha block
                ],
                out_specs=pl.BlockSpec((block_rows, C), lambda i: (i, 0)),
            ),
            compiler_params=_compiler_params(step_bytes),
            cost_estimate=cost,
        )(theta, a2d)
        return out

    # ---------- General path: broadcast, flatten to a lane-dense (rows, lane) slab.
    t = jnp.broadcast_to(theta, out_shape).reshape(-1)
    a = jnp.broadcast_to(alpha_list, out_shape).reshape(-1)
    n = n_out
    n_pad = n
    if n % 128 != 0:
        # One-time pad to a fully (8,128)-aligned slab; avoids masked vst.msk stores.
        n_pad = ((n + 1023) // 1024) * 1024
        t = jnp.pad(t, (0, n_pad - n))
        a = jnp.pad(a, (0, n_pad - n))

    # Largest lane (multiple of 128) that still leaves >= 16 rows (so the grid
    # can have >= 2 balanced steps for the v7x megacore); otherwise largest divisor.
    lane = None
    for cand in (8192, 4096, 2048, 1024, 512, 256, 128):
        if n_pad % cand == 0 and n_pad // cand >= 16:
            lane = cand
            break
    if lane is None:
        for cand in (8192, 4096, 2048, 1024, 512, 256, 128):
            if n_pad % cand == 0:
                lane = cand
                break
    rows = n_pad // lane
    t2d = t.reshape(rows, lane)
    a2d = a.reshape(rows, lane)

    block_rows = _pick_block_rows(rows, lane, target_block_bytes)
    grid = (pl.cdiv(rows, block_rows),)
    step_bytes = block_rows * lane * (t2d.dtype.itemsize + a2d.dtype.itemsize + out_isz)
    cost = pl.CostEstimate(
        flops=int(20 * n_pad),
        transcendentals=int(2 * n_pad),
        bytes_accessed=int(n_pad * (t2d.dtype.itemsize + a2d.dtype.itemsize + out_isz)))

    out2d = pl.pallas_call(
        kernel,
        out_shape=jax.ShapeDtypeStruct((rows, lane), out_dtype),
        grid_spec=pltpu.PrefetchScalarGridSpec(
            num_scalar_prefetch=0,
            grid=grid,
            in_specs=[
                pl.BlockSpec((block_rows, lane), lambda i: (i, 0)),
                pl.BlockSpec((block_rows, lane), lambda i: (i, 0)),
            ],
            out_specs=pl.BlockSpec((block_rows, lane), lambda i: (i, 0)),
        ),
        compiler_params=_compiler_params(step_bytes),
        cost_estimate=cost,
    )(t2d, a2d)

    out_flat = out2d.reshape(-1)
    if n_pad != n:
        out_flat = out_flat[:n]
    return out_flat.reshape(out_shape)


if __name__ == "__main__":
    # Module config (deterministic, in-script): lstm_hid_dim=16 -> feat_dim=32
    # (unused in forward), n_classes=128, scale=4.0, margin=0.2 (unused in forward).
    lstm_hid_dim = 16
    n_classes = 128
    scale = 4.0
    margin = 0.2  # not used in the forward pass

    key = jax.random.PRNGKey(0)
    k1, k2, k3, k4, k5, k6 = jax.random.split(key, 6)

    # Case 1: module-shaped inputs (batch, n_classes), matching alpha shape.
    batch = 8
    theta1 = jax.random.normal(k1, (batch, n_classes), dtype=jnp.float32)
    alpha1 = jax.random.normal(k2, (batch, n_classes), dtype=jnp.float32)
    pred1 = jax.block_until_ready(
        my_loss_forward(theta1, alpha1, scale=scale, force_pallas=True))
    ref1 = jax.nn.sigmoid(scale * jnp.cos(theta1 + alpha1))
    assert pred1.shape == (batch, n_classes)
    assert jnp.max(jnp.abs(pred1 - ref1)) < 1e-5

    # Case 2: per-class alpha (C,) -> resident-alpha path (no pre-broadcast).
    batch2 = 32
    theta2 = jax.random.normal(k3, (batch2, n_classes), dtype=jnp.float32)
    alpha2 = jax.random.normal(k4, (n_classes,), dtype=jnp.float32)
    pred2 = jax.block_until_ready(
        my_loss_forward(theta2, alpha2, scale=scale, force_pallas=True))
    ref2 = jax.nn.sigmoid(scale * jnp.cos(theta2 + alpha2))
    assert pred2.shape == (batch2, n_classes)
    assert jnp.max(jnp.abs(pred2 - ref2)) < 1e-5

    # Case 3: awkward (non-multiple-of-128) size -> padded lane-dense path.
    theta3 = jax.random.normal(k5, (5, 37), dtype=jnp.float32)
    alpha3 = jax.random.normal(k6, (5, 37), dtype=jnp.float32)
    pred3 = jax.block_until_ready(
        my_loss_forward(theta3, alpha3, scale=scale, force_pallas=True))
    ref3 = jax.nn.sigmoid(scale * jnp.cos(theta3 + alpha3))
    assert pred3.shape == (5, 37)
    assert jnp.max(jnp.abs(pred3 - ref3)) < 1e-5

    # Case 4: bf16 I/O (mem-bound: halves read/write bytes); kernel computes in f32.
    theta4 = theta2.astype(jnp.bfloat16)
    alpha4 = alpha2.astype(jnp.bfloat16)
    pred4 = jax.block_until_ready(
        my_loss_forward(theta4, alpha4, scale=scale, force_pallas=True))
    assert pred4.dtype == jnp.bfloat16
    ref4 = jax.nn.sigmoid(scale * jnp.cos(theta4.astype(jnp.float32)
                                          + alpha4.astype(jnp.float32)))
    assert jnp.max(jnp.abs(pred4.astype(jnp.float32) - ref4)) < 1e-2

    print("KERNEL_OK")
</pallas_src>

<mosaic_0001>
module attributes {stable_mosaic.version = 11 : i64} {
  func.func @_myloss_kernel(%arg0: i32, %arg1: memref<1x1024xf32, #tpu.memory_space<vmem>>, %arg2: memref<1x1024xf32, #tpu.memory_space<vmem>>, %arg3: memref<1x1024xf32, #tpu.memory_space<vmem>>) attributes {dimension_semantics = [#tpu.dimension_semantics<parallel>], iteration_bounds = array<i64: 1>, scalar_prefetch = 0 : i64, scratch_operands = 0 : i64, tpu.core_type = #tpu.core_type<tc>, window_params = [{transform_indices = @transform_0, window_bounds = array<i64: 1, 1024>}, {transform_indices = @transform_1, window_bounds = array<i64: 1, 1024>}, {transform_indices = @transform_2, window_bounds = array<i64: 1, 1024>}]} {
    %c0 = arith.constant 0 : index
    %c0_0 = arith.constant 0 : index
    %0 = vector.load %arg1[%c0, %c0_0] : memref<1x1024xf32, #tpu.memory_space<vmem>>, vector<1x1024xf32>
    %c0_1 = arith.constant 0 : index
    %c0_2 = arith.constant 0 : index
    %1 = vector.load %arg2[%c0_1, %c0_2] : memref<1x1024xf32, #tpu.memory_space<vmem>>, vector<1x1024xf32>
    %2 = arith.addf %0, %1 : vector<1x1024xf32>
    %3 = math.cos %2 : vector<1x1024xf32>
    %cst = arith.constant 2.000000e+00 : f32
    %4 = vector.broadcast %cst : f32 to vector<1x1024xf32>
    %5 = arith.mulf %4, %3 : vector<1x1024xf32>
    %6 = math.tanh %5 : vector<1x1024xf32>
    %cst_3 = arith.constant 5.000000e-01 : f32
    %7 = vector.broadcast %cst_3 : f32 to vector<1x1024xf32>
    %8 = arith.mulf %7, %6 : vector<1x1024xf32>
    %cst_4 = arith.constant 5.000000e-01 : f32
    %9 = vector.broadcast %cst_4 : f32 to vector<1x1024xf32>
    %10 = arith.addf %8, %9 : vector<1x1024xf32>
    %c0_5 = arith.constant 0 : index
    %c0_6 = arith.constant 0 : index
    %11 = vector.load %arg3[%c0_5, %c0_6] : memref<1x1024xf32, #tpu.memory_space<vmem>>, vector<1x1024xf32>
    tpu.vector_store %arg3[%c0_5, %c0_6], %10 {strides = array<i32>} : memref<1x1024xf32, #tpu.memory_space<vmem>>, vector<1x1024xf32>,
    return
  }
  func.func @transform_0(%arg0: i32) -> (i32, i32) {
    %c0_i32 = arith.constant 0 : i32
    %c0_i32_0 = arith.constant 0 : i32
    return %arg0, %c0_i32 : i32, i32
  }
  func.func @transform_1(%arg0: i32) -> (i32, i32) {
    %c0_i32 = arith.constant 0 : i32
    %c0_i32_0 = arith.constant 0 : i32
    return %arg0, %c0_i32 : i32, i32
  }
  func.func @transform_2(%arg0: i32) -> (i32, i32) {
    %c0_i32 = arith.constant 0 : i32
    %c0_i32_0 = arith.constant 0 : i32
    return %arg0, %c0_i32 : i32, i32
  }
}

</mosaic_0001>

<llo_original>
// kernel: tpu_custom_call.1
$region0: #{tpu_custom_call.1}
  #allocation0 [shape = 'u32[]', space=smem, size = 0x4, offset = 0x4, fixed_abs, tag = 'smem constant byte address 0x4 - core index']
  #allocation1 [shape = 'u32[144,128]{1,0:T(1,128)}', space=vmem, size = 0x12000, scoped, tag = 'internal scratch']
  %s0 = inlined_call_operand.hbm [shape: f32[1,1024], index: 0, kind: input, shape index: {}]
  %s1 = inlined_call_operand.hbm [shape: f32[1,1024], index: 1, kind: input, shape index: {}]
  %s2 = inlined_call_operand.hbm [shape: f32[1,1024], index: 2, kind: output, shape index: {}]
  %s3 = sld [smem:[#allocation0]]
  $region26: #{tpu_custom_call.1} parent=0
    _
  %s5 = ssub.s32 1, %s3
  %s6 = scalar_select 0, %s5, %s3
  $region1: #{tpu_custom_call.1} parent=0
    #allocation2 [shape = 'u8[4096]{0}', space=vmem, size = 0x1000, scoped, tag = 'input window, operand 0, single buffered']
    #allocation3 [shape = 's32[1]{0}', space=sflag, size = 0x4, scoped, tag = 'scoped memory for tpu_custom_call.1']
    #allocation4 [shape = 's32[1]{0}', space=sflag, size = 0x4, scoped, tag = 'scoped memory for tpu_custom_call.1']
    #allocation5 [shape = 'u8[4096]{0}', space=vmem, size = 0x1000, scoped, tag = 'input window, operand 1, single buffered']
    #allocation6 [shape = 's32[1]{0}', space=sflag, size = 0x4, scoped, tag = 'scoped memory for tpu_custom_call.1']
    #allocation7 [shape = 'u8[4096]{0}', space=vmem, size = 0x1000, scoped, tag = 'output window, operand 0, single buffered']
    %7 = vsyncpa [#allocation3], 0
    %8 = vsyncpa [#allocation6], 0
    %9 = vsyncpa [#allocation4], 0
    // Predicated region
    $region2: #{tpu_custom_call.1} parent=1 // pred_check
      _
    $region3: #{tpu_custom_call.1} parent=1 // pred_check_branch
      %11 = sbr.rel (0) target = $region5
    $region4: #{tpu_custom_call.1} parent=1 // pred_region
      %s13 = ssub.s32 128, 128
      %14 = vsyncadd [#allocation3], %s13
      %s16 = sshll.u32 [#allocation2], 4
      %s17 = int_to_ptr.vmem [resolvable:$true] %s16
      %19 = dma.hbm_to_vmem [thread:$0]  %s0, 128, %s17, [#allocation3]
    $region5: #{tpu_custom_call.1} parent=1 // pred_fallthru
      _
    // Predicated region
    $region6: #{tpu_custom_call.1} parent=1 // pred_check
      _
    $region7: #{tpu_custom_call.1} parent=1 // pred_check_branch
      %21 = sbr.rel (0) target = $region9
    $region8: #{tpu_custom_call.1} parent=1 // pred_region
      %s23 = ssub.s32 128, 128
      %24 = vsyncadd [#allocation6], %s23
      %s26 = sshll.u32 [#allocation5], 4
      %s27 = int_to_ptr.vmem [resolvable:$true] %s26
      %29 = dma.hbm_to_vmem [thread:$0]  %s1, 128, %s27, [#allocation6]
    $region9: #{tpu_custom_call.1} parent=1 // pred_fallthru
      _
    // Predicated region
    $region10: #{tpu_custom_call.1} parent=1 // pred_check
      _
    $region11: #{tpu_custom_call.1} parent=1 // pred_check_branch
      %31 = sbr.rel (0) target = $region13
    $region12: #{tpu_custom_call.1} parent=1 // pred_region
      %32 = dma.done [#allocation3], 128
    $region13: #{tpu_custom_call.1} parent=1 // pred_fallthru
      _
    // Predicated region
    $region14: #{tpu_custom_call.1} parent=1 // pred_check
      _
    $region15: #{tpu_custom_call.1} parent=1 // pred_check_branch
      %34 = sbr.rel (0) target = $region17
    $region16: #{tpu_custom_call.1} parent=1 // pred_region
      %35 = dma.done [#allocation6], 128
    $region17: #{tpu_custom_call.1} parent=1 // pred_fallthru
      _
    %v36 = vld [vmem:[#allocation2] sm:$0xff]
    %v37 = vld [vmem:[#allocation5] sm:$0xff]
    %v38 = vadd.f32 %v36, %v37
    %v39 = vand.u32 2147483647, %v38
    %vm40 = vcmp.le.f32.partialorder %v39, 0.7853982
    %vm41 = vcmp.lt.s32.totalorder %v38, 0
    %v42 = vand.u32 %v38, 2139095040
    %v43 = vshrl.u32 %v42, 23
    %v44 = vsub.s32 %v43, 127
    %v45 = vand.u32 2147483647, %v38
    %v46 = vand.u32 %v45, 8388607
    %v47 = vor.u32 %v46, 8388608
    %v48 = vsub.s32 0, %v47
    %v49 = vadd.s32 %v44, 1
    %vm50 = vcmp.gt.s32.totalorder %v49, 0
    %v51 = vsel %vm50, %v49, 0
    %v52 = vshrl.u32 %v51, 5
    %v53 = vand.u32 %v51, 31
    %v54 = vsub.s32 32, %v53
    %v55 = vshrl.u32 683565275, %v54
    %v56 = vshll.u32 683565275, %v53
    %v57 = vshrl.u32 2475754826, %v54
    %v58 = vor.u32 %v56, %v57
    %v59 = vshll.u32 2475754826, %v53
    %v60 = vshrl.u32 2131351028, %v54
    %v61 = vor.u32 %v59, %v60
    %v62 = vshll.u32 2131351028, %v53
    %v63 = vshrl.u32 2102212464, %v54
    %v64 = vor.u32 %v62, %v63
    %v65 = vshll.u32 2102212464, %v53
    %v66 = vshrl.u32 920167782, %v54
    %v67 = vor.u32 %v65, %v66
    %v68 = vshll.u32 920167782, %v53
    %v69 = vshrl.u32 1326507024, %v54
    %v70 = vor.u32 %v68, %v69
    %vm71 = vcmp.lt.s32.totalorder %v52, 1
    %vm72 = vcmp.lt.s32.totalorder %v52, 2
    %vm73 = vcmp.lt.s32.totalorder %v52, 3
    %vm74 = vcmp.lt.s32.totalorder %v52, 4
    %v75 = vsel %vm71, %v55, %v58
    %v76 = vsel %vm74, %v64, 2102212464
    %v77 = vsel %vm73, %v61, %v76
    %v78 = vsel %vm72, %v75, %v77
    %v79 = vsel %vm71, %v58, %v61
    %v80 = vsel %vm74, %v67, 920167782
    %v81 = vsel %vm73, %v64, %v80
    %v82 = vsel %vm72, %v79, %v81
    %v83 = vsel %vm71, %v61, %v64
    %v84 = vsel %vm74, %v70, 1326507024
    %v85 = vsel %vm73, %v67, %v84
    %v86 = vsel %vm72, %v83, %v85
    %v87 = vshll.u32 %v47, 8
    %v88 = vmul.u32.u64.compose %v87, %v86
    %v89 = vextract.low.u32 %v88
    %v90 = vextract.high.u32 %v88
    %v91 = vmul.u32.u64.compose %v87, %v82
    %v92 = vextract.low.u32 %v91
    %v93 = vextract.high.u32 %v91
    %v94 = vmul.u32 %v87, %v78
    %v95 = vadd.s32 %v90, %v92
    %vm96 = vc.u32 %v90, %v92
    %v97 = vadd.s32 %v93, 1
    %v98 = vsel %vm96, %v97, %v93
    %v99 = vadd.s32 %v94, %v98
    %v100 = vadd.s32 %v99, 536870912
    %v101 = vshrl.u32 %v100, 30
    %v102 = vshll.u32 %v101, 30
    %v103 = vsub.s32 %v99, %v102
    %vm104 = vcmp.lt.s32.totalorder %v103, 0
    %v105 = vsub.s32 0, %v103
    %v106 = vsel %vm104, %v105, %v103
    %v107 = vclz %v106
    %v108 = vsub.s32 %v107, 2
    %vm109 = vcmp.gt.s32.totalorder 0, %v108
    %v110 = vsel %vm109, 0, %v108
    %v111 = vsub.s32 32, %v110
    %v112 = vshll.u32 %v103, %v110
    %v113 = vshrl.u32 %v95, %v111
    %v114 = vor.u32 %v112, %v113
    %v115 = vsub.s32 4294967266, %v110
    %v116 = vadd.s32 %v115, 127
    %v117 = vshll.u32 %v116, 23
    %v118 = vor.u32 4788187, %v117
    %v119 = vand.u32 2147483647, %v118
    %v121 = vcvt.s32.f32 %v114
    %v122 = vmul.f32 %v121, %v119
    %v123 = vxor.u32 %v122, 2147483648
    %v124 = vsel %vm41, %v123, %v122
    %v125 = vsub.s32 4, %v101
    %v126 = vsel %vm41, %v125, %v101
    %v127 = vsel %vm40, %v38, %v124
    %v128 = vsel %vm40, 0, %v126
    %v129 = vcosq.f32.pop %v127
    %v130 = vsinq.f32.pop %v127
    %vm131 = vweird.f32 %v38
    %v132 = vand.u32 %v128, 3
    %vm133 = vcmp.lt.s32.totalorder %v132, 2
    %vm134 = vcmp.eq.s32.totalorder %v132, 0
    %v135 = vxor.u32 %v130, 2147483648
    %v136 = vsel %vm134, %v129, %v135
    %vm137 = vcmp.eq.s32.totalorder %v132, 2
    %v138 = vxor.u32 %v129, 2147483648
    %v139 = vsel %vm137, %v138, %v130
    %v140 = vsel %vm133, %v136, %v139
    %v141 = vsel %vm131, nan, %v140
    %v142 = vmul.f32 %v141, 2.0
    %v143 = vtanh.pop %v142
    %v144 = vmul.f32 %v143, 0.5
    %v145 = vadd.f32 %v144, 0.5
    %146 = vst [vmem:[#allocation7] sm:$0xff] %v145
    // Predicated region
    $region18: #{tpu_custom_call.1} parent=1 // pred_check
      _
    $region19: #{tpu_custom_call.1} parent=1 // pred_check_branch
      %148 = sbr.rel (0) target = $region21
    $region20: #{tpu_custom_call.1} parent=1 // pred_region
      %s150 = ssub.s32 128, 128
      %151 = vsyncadd [#allocation4], %s150
      %s153 = sshll.u32 [#allocation7], 4
      %s154 = int_to_ptr.vmem [resolvable:$true] %s153
      %156 = dma.vmem_to_hbm [thread:$0]  %s154, 128, %s2, [#allocation4]
    $region21: #{tpu_custom_call.1} parent=1 // pred_fallthru
      _
    // Predicated region
    $region22: #{tpu_custom_call.1} parent=1 // pred_check
      _
    $region23: #{tpu_custom_call.1} parent=1 // pred_check_branch
      %158 = sbr.rel (0) target = $region25
    $region24: #{tpu_custom_call.1} parent=1 // pred_region
      %159 = dma.done [#allocation4], 128
    $region25: #{tpu_custom_call.1} parent=1 // pred_fallthru
      _
    %160 = vsyncpa [#allocation3], 1
    %161 = vsyncpa [#allocation6], 1
    %162 = vsyncpa [#allocation4], 1

</llo_original>
